<compile_context>
chip_gen: v7x
topology: tpu7x:2x2x1
jax: 0.10.0
libtpu: 0.0.40
codegen_flags: <defaults>
</compile_context>

<pallas_src>
import functools

import jax
import jax.numpy as jnp
from jax.experimental import pallas as pl
from jax.experimental.pallas import tpu as pltpu


def _round_up(n, m):
    return ((n + m - 1) // m) * m


def _vmem_capacity_bytes():
    try:
        return int(pltpu.get_tpu_info().vmem_capacity_bytes)
    except Exception:
        # Conservative default: v7x has the smallest VMEM (64 MiB per TC).
        return 64 * 1024 * 1024


def _pick_row_tile(rows, feat_p, itemsize, vmem_cap):
    # Budget ~3/8 of VMEM for the double-buffered input + output tiles
    # (2x in + 2x out), leaving headroom for params / compiler scratch.
    budget = (vmem_cap * 3) // 8
    per_row = feat_p * 4 * itemsize
    tile = budget // max(per_row, 1)
    # Align to 32 rows (covers f32/bf16/int8 sublane packing), cap at 1024.
    tile = max(32, min(1024, (tile // 32) * 32))
    # Don't pad tiny inputs beyond one tile's worth of rows.
    tile = min(tile, _round_up(rows, 32))
    # Keep at least 2 grid steps on larger inputs so both v7x TCs get work.
    if rows >= 64:
        tile = min(tile, max(32, (rows // 2 // 32) * 32))
    return tile


def _layernorm_kernel(x_ref, g_ref, b_ref, o_ref, *, eps, features):
    x = x_ref[...].astype(jnp.float32)                       # (tm, Fp)

    # One-pass mean/variance: sum and sum-of-squares in a single sweep.
    # Feature padding is zeros, so both sums equal the sums over real columns.
    s = jnp.sum(x, axis=-1, keepdims=True)                   # (tm, 1)
    sq = jnp.sum(x * x, axis=-1, keepdims=True)              # (tm, 1)
    mean = s * (1.0 / features)
    denom = max(features - 1, 1)                              # torch.std: unbiased (N-1)
    var = jnp.maximum((sq - s * mean) * (1.0 / denom), 0.0)   # guard cancellation
    std = jnp.sqrt(var)

    # Per-row reciprocal (exact; approx=True would trade a little precision)
    # instead of a full (tm, Fp) divide.
    inv = pl.reciprocal(std + eps, approx=False)              # (tm, 1)

    g = g_ref[...].astype(jnp.float32)                        # (1, Fp), zero-padded
    b = b_ref[...].astype(jnp.float32)                        # (1, Fp), zero-padded
    y = (x - mean) * inv * g + b                              # padded cols -> 0
    o_ref[...] = y.astype(o_ref.dtype)


def layer_norm(x, a_2, b_2, eps=1e-6):
    """x: (..., features); a_2, b_2: (features,). Returns same shape/dtype as x."""
    features = x.shape[-1]
    orig_shape = x.shape

    x2d = x.reshape(-1, features)
    rows = x2d.shape[0]
    itemsize = jnp.dtype(x.dtype).itemsize

    # Lane-dense feature dimension: pad to a multiple of 128.
    feat_p = _round_up(features, 128)

    vmem_cap = _vmem_capacity_bytes()
    row_tile = _pick_row_tile(rows, feat_p, itemsize, vmem_cap)
    rows_p = _round_up(rows, row_tile)

    # Zero-pad activations and params (zeros are transparent to the one-pass
    # statistics and produce zeros in the padded output columns).
    if rows_p != rows or feat_p != features:
        x2d = jnp.pad(x2d, ((0, rows_p - rows), (0, feat_p - features)))
    g = jnp.pad(a_2, (0, feat_p - features)).reshape(1, feat_p)
    b = jnp.pad(b_2, (0, feat_p - features)).reshape(1, feat_p)

    # Scoped VMEM limit: double-buffered in+out tiles + params + slack.
    needed = 4 * row_tile * feat_p * itemsize + 4 * feat_p * 4 + (2 << 20)
    vmem_limit = int(min((vmem_cap * 3) // 4, max(needed, 16 << 20)))

    kernel = functools.partial(_layernorm_kernel, eps=eps, features=features)

    out = pl.pallas_call(
        kernel,
        out_shape=jax.ShapeDtypeStruct((rows_p, feat_p), x.dtype),
        grid_spec=pltpu.PrefetchScalarGridSpec(
            num_scalar_prefetch=0,
            grid=(rows_p // row_tile,),
            in_specs=[
                pl.BlockSpec((row_tile, feat_p), lambda i: (i, 0)),
                pl.BlockSpec((1, feat_p), lambda i: (0, 0)),
                pl.BlockSpec((1, feat_p), lambda i: (0, 0)),
            ],
            out_specs=pl.BlockSpec((row_tile, feat_p), lambda i: (i, 0)),
        ),
        compiler_params=pltpu.CompilerParams(
            dimension_semantics=("parallel",),
            vmem_limit_bytes=vmem_limit,
        ),
    )(x2d, g, b)

    return out[:rows, :features].reshape(orig_shape)


if __name__ == "__main__":
    key = jax.random.PRNGKey(0)
    batch, seq, hidden = 2, 8, 32

    x = jax.random.normal(key, (batch, seq, hidden), dtype=jnp.float32)

    # Deterministic parameter init matching nn.Parameter(torch.ones/zeros(features))
    a_2 = jnp.ones((hidden,), dtype=jnp.float32)
    b_2 = jnp.zeros((hidden,), dtype=jnp.float32)

    out = layer_norm(x, a_2, b_2, eps=1e-6)
    out = jax.block_until_ready(out)

    # Pure-JAX reference (unbiased std, eps added to std — module semantics)
    mean = jnp.mean(x, axis=-1, keepdims=True)
    std = jnp.sqrt(jnp.sum((x - mean) ** 2, axis=-1, keepdims=True) / (hidden - 1))
    ref = a_2 * (x - mean) / (std + 1e-6) + b_2
    assert jnp.allclose(out, ref, atol=1e-5, rtol=1e-5), "mismatch vs reference"

    print("KERNEL_OK")
</pallas_src>

<mosaic_0001>
module attributes {stable_mosaic.version = 11 : i64} {
  func.func @_layernorm_kernel(%arg0: i32, %arg1: memref<32x128xf32, #tpu.memory_space<vmem>>, %arg2: memref<1x128xf32, #tpu.memory_space<vmem>>, %arg3: memref<1x128xf32, #tpu.memory_space<vmem>>, %arg4: memref<32x128xf32, #tpu.memory_space<vmem>>) attributes {dimension_semantics = [#tpu.dimension_semantics<parallel>], iteration_bounds = array<i64: 1>, scalar_prefetch = 0 : i64, scratch_operands = 0 : i64, tpu.core_type = #tpu.core_type<tc>, window_params = [{transform_indices = @transform_0, window_bounds = array<i64: 32, 128>}, {pipeline_mode = #tpu.pipeline_mode<synchronous>, transform_indices = @transform_1, window_bounds = array<i64: 1, 128>}, {pipeline_mode = #tpu.pipeline_mode<synchronous>, transform_indices = @transform_2, window_bounds = array<i64: 1, 128>}, {transform_indices = @transform_3, window_bounds = array<i64: 32, 128>}]} {
    %c0 = arith.constant 0 : index
    %c0_0 = arith.constant 0 : index
    %0 = vector.load %arg1[%c0, %c0_0] : memref<32x128xf32, #tpu.memory_space<vmem>>, vector<32x128xf32>
    %cst = arith.constant dense<0.000000e+00> : vector<32xf32>
    %1 = vector.multi_reduction <add>, %0, %cst [1] : vector<32x128xf32> to vector<32xf32>
    %2 = vector.shape_cast %1 : vector<32xf32> to vector<32x1xf32>
    %3 = arith.mulf %0, %0 : vector<32x128xf32>
    %cst_1 = arith.constant dense<0.000000e+00> : vector<32xf32>
    %4 = vector.multi_reduction <add>, %3, %cst_1 [1] : vector<32x128xf32> to vector<32xf32>
    %5 = vector.shape_cast %4 : vector<32xf32> to vector<32x1xf32>
    %cst_2 = arith.constant 3.125000e-02 : f32
    %6 = vector.broadcast %cst_2 : f32 to vector<32x1xf32>
    %7 = arith.mulf %2, %6 : vector<32x1xf32>
    %8 = arith.mulf %2, %7 : vector<32x1xf32>
    %9 = arith.subf %5, %8 : vector<32x1xf32>
    %cst_3 = arith.constant 0.0322580636 : f32
    %10 = vector.broadcast %cst_3 : f32 to vector<32x1xf32>
    %11 = arith.mulf %9, %10 : vector<32x1xf32>
    %cst_4 = arith.constant 0.000000e+00 : f32
    %12 = vector.broadcast %cst_4 : f32 to vector<32x1xf32>
    %13 = arith.maximumf %11, %12 : vector<32x1xf32>
    %14 = math.sqrt %13 : vector<32x1xf32>
    %cst_5 = arith.constant 9.99999997E-7 : f32
    %15 = vector.broadcast %cst_5 : f32 to vector<32x1xf32>
    %16 = arith.addf %14, %15 : vector<32x1xf32>
    %17 = tpu.reciprocal %16 : vector<32x1xf32> -> vector<32x1xf32>
    %c0_6 = arith.constant 0 : index
    %c0_7 = arith.constant 0 : index
    %18 = vector.load %arg2[%c0_6, %c0_7] : memref<1x128xf32, #tpu.memory_space<vmem>>, vector<1x128xf32>
    %c0_8 = arith.constant 0 : index
    %c0_9 = arith.constant 0 : index
    %19 = vector.load %arg3[%c0_8, %c0_9] : memref<1x128xf32, #tpu.memory_space<vmem>>, vector<1x128xf32>
    %20 = vector.broadcast %7 : vector<32x1xf32> to vector<32x128xf32>
    %21 = arith.subf %0, %20 : vector<32x128xf32>
    %22 = vector.broadcast %17 : vector<32x1xf32> to vector<32x128xf32>
    %23 = arith.mulf %21, %22 : vector<32x128xf32>
    %24 = vector.broadcast %18 : vector<1x128xf32> to vector<32x128xf32>
    %25 = arith.mulf %23, %24 : vector<32x128xf32>
    %26 = vector.broadcast %19 : vector<1x128xf32> to vector<32x128xf32>
    %27 = arith.addf %25, %26 : vector<32x128xf32>
    %c0_10 = arith.constant 0 : index
    %c0_11 = arith.constant 0 : index
    %28 = vector.load %arg4[%c0_10, %c0_11] : memref<32x128xf32, #tpu.memory_space<vmem>>, vector<32x128xf32>
    tpu.vector_store %arg4[%c0_10, %c0_11], %27 {strides = array<i32>} : memref<32x128xf32, #tpu.memory_space<vmem>>, vector<32x128xf32>,
    return
  }
  func.func @transform_0(%arg0: i32) -> (i32, i32) {
    %c0_i32 = arith.constant 0 : i32
    %c0_i32_0 = arith.constant 0 : i32
    return %arg0, %c0_i32 : i32, i32
  }
  func.func @transform_1(%arg0: i32) -> (i32, i32) {
    %c0_i32 = arith.constant 0 : i32
    %c0_i32_0 = arith.constant 0 : i32
    %c0_i32_1 = arith.constant 0 : i32
    return %c0_i32, %c0_i32_0 : i32, i32
  }
  func.func @transform_2(%arg0: i32) -> (i32, i32) {
    %c0_i32 = arith.constant 0 : i32
    %c0_i32_0 = arith.constant 0 : i32
    %c0_i32_1 = arith.constant 0 : i32
    return %c0_i32, %c0_i32_0 : i32, i32
  }
  func.func @transform_3(%arg0: i32) -> (i32, i32) {
    %c0_i32 = arith.constant 0 : i32
    %c0_i32_0 = arith.constant 0 : i32
    return %arg0, %c0_i32 : i32, i32
  }
}

</mosaic_0001>

<llo_original>
// kernel: tpu_custom_call.1
$region0: #{tpu_custom_call.1}
  #allocation0 [shape = 'u32[]', space=smem, size = 0x4, offset = 0x4, fixed_abs, tag = 'smem constant byte address 0x4 - core index']
  #allocation1 [shape = 'u32[144,128]{1,0:T(1,128)}', space=vmem, size = 0x12000, scoped, tag = 'internal scratch']
  %s0 = inlined_call_operand.hbm [shape: f32[32,128], index: 0, kind: input, shape index: {}]
  %s1 = inlined_call_operand.vmem [shape: f32[1,128], index: 1, kind: input, shape index: {}]
  %s2 = inlined_call_operand.vmem [shape: f32[1,128], index: 2, kind: input, shape index: {}]
  %s3 = inlined_call_operand.hbm [shape: f32[32,128], index: 3, kind: output, shape index: {}]
  %s4 = sld [smem:[#allocation0]]
  $region26: #{tpu_custom_call.1} parent=0
    _
  %s6 = ssub.s32 1, %s4
  %s7 = scalar_select 0, %s6, %s4
  $region1: #{tpu_custom_call.1} parent=0
    #allocation2 [shape = 'u8[16384]{0}', space=vmem, size = 0x4000, scoped, tag = 'input window, operand 0, single buffered']
    #allocation3 [shape = 's32[1]{0}', space=sflag, size = 0x4, scoped, tag = 'scoped memory for tpu_custom_call.1']
    #allocation4 [shape = 's32[1]{0}', space=sflag, size = 0x4, scoped, tag = 'scoped memory for tpu_custom_call.1']
    #allocation5 [shape = 'u8[16384]{0}', space=vmem, size = 0x4000, scoped, tag = 'output window, operand 0, single buffered']
    %8 = vsyncpa [#allocation3], 0
    %9 = vsyncpa [#allocation4], 0
    // Predicated region
    $region2: #{tpu_custom_call.1} parent=1 // pred_check
      _
    $region3: #{tpu_custom_call.1} parent=1 // pred_check_branch
      %11 = sbr.rel (0) target = $region5
    $region4: #{tpu_custom_call.1} parent=1 // pred_region
      %s13 = ssub.s32 512, 512
      %14 = vsyncadd [#allocation3], %s13
      %s15 = sshll.u32 [#allocation2], 4
      %s16 = int_to_ptr.vmem [resolvable:$true] %s15
      %21 = dma.hbm_to_vmem [thread:$0]  %s0, 512, %s16, [#allocation3], 128, 128, 8
    $region5: #{tpu_custom_call.1} parent=1 // pred_fallthru
      _
    // Predicated region
    $region6: #{tpu_custom_call.1} parent=1 // pred_check
      _
    $region7: #{tpu_custom_call.1} parent=1 // pred_check_branch
      %23 = sbr.rel (0) target = $region9
    $region8: #{tpu_custom_call.1} parent=1 // pred_region
      _
    $region9: #{tpu_custom_call.1} parent=1 // pred_fallthru
      _
    // Predicated region
    $region10: #{tpu_custom_call.1} parent=1 // pred_check
      _
    $region11: #{tpu_custom_call.1} parent=1 // pred_check_branch
      %25 = sbr.rel (0) target = $region13
    $region12: #{tpu_custom_call.1} parent=1 // pred_region
      _
    $region13: #{tpu_custom_call.1} parent=1 // pred_fallthru
      _
    // Predicated region
    $region14: #{tpu_custom_call.1} parent=1 // pred_check
      _
    $region15: #{tpu_custom_call.1} parent=1 // pred_check_branch
      %27 = sbr.rel (0) target = $region17
    $region16: #{tpu_custom_call.1} parent=1 // pred_region
      %28 = dma.done [#allocation3], 512
    $region17: #{tpu_custom_call.1} parent=1 // pred_fallthru
      _
    %v29 = vld [vmem:[#allocation2] sm:$0xff]
    %v30 = vld [vmem:[#allocation2 + $0x8] sm:$0xff]
    %v31 = vld [vmem:[#allocation2 + $0x10] sm:$0xff]
    %v32 = vld [vmem:[#allocation2 + $0x18] sm:$0xff]
    %33 = vadd.xlane.f32.xlu0 %v29
    %v34 = vpop.xlane.xlu0 %33
    %35 = vadd.xlane.f32.xlu0 %v30
    %v36 = vpop.xlane.xlu0 %35
    %37 = vadd.xlane.f32.xlu0 %v31
    %v38 = vpop.xlane.xlu0 %37
    %39 = vadd.xlane.f32.xlu0 %v32
    %v40 = vpop.xlane.xlu0 %39
    %v41 = vmul.f32 %v29, %v29
    %v42 = vmul.f32 %v30, %v30
    %v43 = vmul.f32 %v31, %v31
    %v44 = vmul.f32 %v32, %v32
    %45 = vadd.xlane.f32.xlu0 %v41
    %v46 = vpop.xlane.xlu0 %45
    %47 = vadd.xlane.f32.xlu0 %v42
    %v48 = vpop.xlane.xlu0 %47
    %49 = vadd.xlane.f32.xlu0 %v43
    %v50 = vpop.xlane.xlu0 %49
    %51 = vadd.xlane.f32.xlu0 %v44
    %v52 = vpop.xlane.xlu0 %51
    %v53 = vmul.f32 %v34, 0.03125
    %v54 = vmul.f32 %v36, 0.03125
    %v55 = vmul.f32 %v38, 0.03125
    %v56 = vmul.f32 %v40, 0.03125
    %v57 = vmul.f32 %v34, %v53
    %v58 = vmul.f32 %v36, %v54
    %v59 = vmul.f32 %v38, %v55
    %v60 = vmul.f32 %v40, %v56
    %v61 = vsub.f32 %v46, %v57
    %v62 = vsub.f32 %v48, %v58
    %v63 = vsub.f32 %v50, %v59
    %v64 = vsub.f32 %v52, %v60
    %v65 = vmul.f32 %v61, 0.032258064
    %v66 = vmul.f32 %v62, 0.032258064
    %v67 = vmul.f32 %v63, 0.032258064
    %v68 = vmul.f32 %v64, 0.032258064
    %v69 = vmax.f32 %v65, 0.0
    %v70 = vmax.f32 %v66, 0.0
    %v71 = vmax.f32 %v67, 0.0
    %v72 = vmax.f32 %v68, 0.0
    %v73 = vrsqrt.pop %v69
    %v74 = vmul.f32 %v69, %v73
    %vm75 = vcmp.eq.f32.partialorder %v69, inf
    %v76 = vsel %vm75, %v69, %v74
    %vm77 = vcmp.eq.f32.partialorder %v69, 0.0
    %v78 = vand.u32 %v69, 2147483648
    %v79 = vsel %vm77, %v78, %v76
    %v80 = vrsqrt.pop %v70
    %v81 = vmul.f32 %v70, %v80
    %vm82 = vcmp.eq.f32.partialorder %v70, inf
    %v83 = vsel %vm82, %v70, %v81
    %vm84 = vcmp.eq.f32.partialorder %v70, 0.0
    %v85 = vand.u32 %v70, 2147483648
    %v86 = vsel %vm84, %v85, %v83
    %v87 = vrsqrt.pop %v71
    %v88 = vmul.f32 %v71, %v87
    %vm89 = vcmp.eq.f32.partialorder %v71, inf
    %v90 = vsel %vm89, %v71, %v88
    %vm91 = vcmp.eq.f32.partialorder %v71, 0.0
    %v92 = vand.u32 %v71, 2147483648
    %v93 = vsel %vm91, %v92, %v90
    %v94 = vrsqrt.pop %v72
    %v95 = vmul.f32 %v72, %v94
    %vm96 = vcmp.eq.f32.partialorder %v72, inf
    %v97 = vsel %vm96, %v72, %v95
    %vm98 = vcmp.eq.f32.partialorder %v72, 0.0
    %v99 = vand.u32 %v72, 2147483648
    %v100 = vsel %vm98, %v99, %v97
    %v101 = vadd.f32 %v79, 1e-06
    %v102 = vadd.f32 %v86, 1e-06
    %v103 = vadd.f32 %v93, 1e-06
    %v104 = vadd.f32 %v100, 1e-06
    %v105 = vrcp.pop %v101
    %v106 = vrcp.pop %v102
    %v107 = vrcp.pop %v103
    %v108 = vrcp.pop %v104
    %v109 = vld [vmem:[%s1] sm:$0x1]
    %v110 = vld [vmem:[%s2] sm:$0x1]
    %v111 = vsub.f32 %v29, %v53
    %v112 = vsub.f32 %v30, %v54
    %v113 = vsub.f32 %v31, %v55
    %v114 = vsub.f32 %v32, %v56
    %v115 = vmul.f32 %v111, %v105
    %v116 = vmul.f32 %v112, %v106
    %v117 = vmul.f32 %v113, %v107
    %v118 = vmul.f32 %v114, %v108
    %v120 = vlaneseq
    %v121 = vshrl.u32 %v120, 7
    %v122 = vsub.s32 0, %v121
    %v123 = vrot.slane %v109, %v122
    %v125 = vmul.f32 %v115, %v123
    %v126 = vmul.f32 %v116, %v123
    %v127 = vmul.f32 %v117, %v123
    %v128 = vmul.f32 %v118, %v123
    %v130 = vlaneseq
    %v131 = vshrl.u32 %v130, 7
    %v132 = vsub.s32 0, %v131
    %v133 = vrot.slane %v110, %v132
    %v135 = vadd.f32 %v125, %v133
    %v136 = vadd.f32 %v126, %v133
    %v137 = vadd.f32 %v127, %v133
    %v138 = vadd.f32 %v128, %v133
    %139 = vst [vmem:[#allocation5] sm:$0xff] %v135
    %140 = vst [vmem:[#allocation5 + $0x8] sm:$0xff] %v136
    %141 = vst [vmem:[#allocation5 + $0x10] sm:$0xff] %v137
    %142 = vst [vmem:[#allocation5 + $0x18] sm:$0xff] %v138
    // Predicated region
    $region18: #{tpu_custom_call.1} parent=1 // pred_check
      _
    $region19: #{tpu_custom_call.1} parent=1 // pred_check_branch
      %144 = sbr.rel (0) target = $region21
    $region20: #{tpu_custom_call.1} parent=1 // pred_region
      %s146 = ssub.s32 512, 512
      %147 = vsyncadd [#allocation4], %s146
      %s148 = sshll.u32 [#allocation5], 4
      %s149 = int_to_ptr.vmem [resolvable:$true] %s148
      %154 = dma.vmem_to_hbm [thread:$0]  %s149, 512, %s3, [#allocation4], 128, 128, 8
    $region21: #{tpu_custom_call.1} parent=1 // pred_fallthru
      _
    // Predicated region
    $region22: #{tpu_custom_call.1} parent=1 // pred_check
      _
    $region23: #{tpu_custom_call.1} parent=1 // pred_check_branch
      %156 = sbr.rel (0) target = $region25
    $region24: #{tpu_custom_call.1} parent=1 // pred_region
      %157 = dma.done [#allocation4], 512
    $region25: #{tpu_custom_call.1} parent=1 // pred_fallthru
      _
    %158 = vsyncpa [#allocation3], 1
    %159 = vsyncpa [#allocation4], 1

</llo_original>
